<compile_context>
chip_gen: v6e
topology: v6e:2x2x1
jax: 0.10.0
libtpu: 0.0.40
codegen_flags: <defaults>
</compile_context>

<pallas_src>
import functools
import math

import jax
import jax.numpy as jnp
from jax.experimental import pallas as pl
from jax.experimental.pallas import tpu as pltpu


# ----------------------------- Pallas kernel -----------------------------

def _silu(v):
    # v * sigmoid(v); reciprocal routed to the EUP slot (approx vrcp).
    return v * pl.reciprocal(1.0 + jnp.exp(-v), approx=True)


def _unet_block_kernel(x_ref, t_ref, w1a_ref, w1b_ref, b1_ref,
                       w2a_ref, w2b_ref, b2_ref, o_ref,
                       x4a_ref, x4b_ref, *, height, width):
    """One batch-block; batch folded into the lane axis.

    x_ref     : (Cin,  N)       N = B_blk * H * W, f32
    t_ref     : (1,    N)       pre-tiled time-embedding row (computed in wrapper), f32
    w1a/w1b   : (Cout, 2*Cin)   conv1 weight K-halves, taps {(0,0),(0,1)} / {(1,0),(1,1)}, bf16
    b1_ref    : (Cout, 1)       f32
    w2a/w2b   : (Cout, 2*Cout)  conv2 weight K-halves, bf16
    b2_ref    : (Cout, 1)       f32
    o_ref     : (Cout, N)       f32
    x4a/x4b   : VMEM (4*Cin, N) / (4*Cout, N) bf16 tap scratch
    """
    hw = height * width
    n = x_ref.shape[1]
    cin = x_ref.shape[0]
    cout = o_ref.shape[0]

    # Per-image lane position: masks the bottom/right 'same'-padding boundary AND the
    # image boundary (taps must not bleed into the next image folded on the lane axis).
    lane = jax.lax.broadcasted_iota(jnp.int32, (1, n), 1)
    pos = lane % hw                        # position within this image
    m_w = (pos % width) < (width - 1)      # (h, w+1) in bounds
    m_h = pos < (hw - width)               # (h+1, w) in bounds
    m_wh = jnp.logical_and(m_w, m_h)       # (h+1, w+1) in bounds

    def conv2x2(v, c, scr_ref, wa_ref, wb_ref, b_ref):
        # 2x2 'same' conv (pad bottom/right). Positive roll of n-k == gather from i+k
        # (XLU lane rotation); out-of-image positions zeroed by the masks above.
        # K-half 0: taps (0,0), (0,1) -> start the MXU on them while K-half 1's
        # rolls/masks are still being produced.
        scr_ref[pl.ds(0, c), :] = v.astype(jnp.bfloat16)
        scr_ref[pl.ds(c, c), :] = jnp.where(
            m_w, pltpu.roll(v, n - 1, axis=1), 0.0).astype(jnp.bfloat16)
        acc = jnp.dot(wa_ref[...], scr_ref[pl.ds(0, 2 * c), :],
                      preferred_element_type=jnp.float32)
        # K-half 1: taps (1,0), (1,1).
        scr_ref[pl.ds(2 * c, c), :] = jnp.where(
            m_h, pltpu.roll(v, n - width, axis=1), 0.0).astype(jnp.bfloat16)
        scr_ref[pl.ds(3 * c, c), :] = jnp.where(
            m_wh, pltpu.roll(v, n - width - 1, axis=1), 0.0).astype(jnp.bfloat16)
        acc = acc + jnp.dot(wb_ref[...], scr_ref[pl.ds(2 * c, 2 * c), :],
                            preferred_element_type=jnp.float32)
        return acc + b_ref[...]            # (Cout,1) bias, broadcast over lanes (f32)

    x = x_ref[...]                                                   # (Cin, N) f32
    h = _silu(conv2x2(x, cin, x4a_ref, w1a_ref, w1b_ref, b1_ref))    # conv1 + SiLU
    h = h + t_ref[...]                     # torch `x + t[:, None, None]`: varies along W,
                                           # broadcast over channels (sublanes)
    # attn = nn.Identity() (attention=False default)
    # TODO(synk): attention=True path (AttentionConv / MultiheadAttention) not implemented.
    h = _silu(conv2x2(h, cout, x4b_ref, w2a_ref, w2b_ref, b2_ref))   # conv2 + SiLU
    o_ref[...] = h.astype(o_ref.dtype)


# ----------------------------- wrapper -----------------------------

def _pack_conv_weight(w):
    # PyTorch Conv2d weight (Cout, Cin, 2, 2) -> (Cout, 4*Cin),
    # taps ordered (0,0),(0,1),(1,0),(1,1) (tap-major, then input channel).
    cout, cin = w.shape[0], w.shape[1]
    return jnp.transpose(w, (0, 2, 3, 1)).reshape(cout, 4 * cin)


def unet_conv_block_forward(x, t, params):
    """x: (B, Cin, H, W) NCHW float32; t: (B, Din) or None. Returns (B, Cout, H, W)."""
    B, Cin, H, W = x.shape
    Cout = params["conv1_b"].shape[0]
    HW = H * W

    # 2-way "parallel" grid: one half-batch per v7x TensorCore; on v5e/v6e the extra
    # step costs ~0.35 us. Remaining batch is folded into the lane axis.
    grid_b = 2 if (B % 2 == 0 and B >= 2) else 1
    b_blk = B // grid_b
    n_blk = b_blk * HW
    assert n_blk % 128 == 0, "B_blk * H * W must be a multiple of 128"

    # NCHW -> (Cin, B*HW): channels on sublanes, batch folded onto lanes (tiny XLA copy).
    x_folded = jnp.transpose(x, (1, 0, 2, 3)).reshape(Cin, B * HW).astype(jnp.float32)

    if t is not None:
        # torch `x + t[:, None, None]` broadcasts (B,1,1,Cout) vs (B,Cout,H,W):
        # only valid when Cout == W (added value varies along the width axis).
        assert Cout == W, "UNetConvBlock t-broadcast requires out_channels == image width"
        t_emb = (t.astype(jnp.float32) @ params["mlp_w"].T.astype(jnp.float32)
                 + params["mlp_b"].astype(jnp.float32))               # (B, Cout) tiny XLA GEMM
        t_row = jnp.broadcast_to(t_emb[:, None, :], (B, H, W)).reshape(1, B * HW)
    else:
        t_row = jnp.zeros((1, B * HW), jnp.float32)

    # bf16 MXU operands (f32 accumulation in-kernel), split into the two K-halves.
    w1p = _pack_conv_weight(params["conv1_w"]).astype(jnp.bfloat16)    # (Cout, 4*Cin)
    w2p = _pack_conv_weight(params["conv2_w"]).astype(jnp.bfloat16)    # (Cout, 4*Cout)
    w1a, w1b = w1p[:, :2 * Cin], w1p[:, 2 * Cin:]
    w2a, w2b = w2p[:, :2 * Cout], w2p[:, 2 * Cout:]
    b1 = params["conv1_b"].reshape(Cout, 1).astype(jnp.float32)
    b2 = params["conv2_b"].reshape(Cout, 1).astype(jnp.float32)

    kernel = functools.partial(_unet_block_kernel, height=H, width=W)
    out = pl.pallas_call(
        kernel,
        out_shape=jax.ShapeDtypeStruct((Cout, B * HW), jnp.float32),
        grid_spec=pltpu.PrefetchScalarGridSpec(
            num_scalar_prefetch=0,
            grid=(grid_b,),
            in_specs=[
                pl.BlockSpec((Cin, n_blk), lambda i: (0, i)),        # x (per batch-block)
                pl.BlockSpec((1, n_blk), lambda i: (0, i)),          # pre-tiled t row
                pl.BlockSpec((Cout, 2 * Cin), lambda i: (0, 0)),     # conv1 W, K-half 0
                pl.BlockSpec((Cout, 2 * Cin), lambda i: (0, 0)),     # conv1 W, K-half 1
                pl.BlockSpec((Cout, 1), lambda i: (0, 0)),           # conv1 b
                pl.BlockSpec((Cout, 2 * Cout), lambda i: (0, 0)),    # conv2 W, K-half 0
                pl.BlockSpec((Cout, 2 * Cout), lambda i: (0, 0)),    # conv2 W, K-half 1
                pl.BlockSpec((Cout, 1), lambda i: (0, 0)),           # conv2 b
            ],
            out_specs=pl.BlockSpec((Cout, n_blk), lambda i: (0, i)),
            scratch_shapes=[
                pltpu.VMEM((4 * Cin, n_blk), jnp.bfloat16),          # conv1 tap stack
                pltpu.VMEM((4 * Cout, n_blk), jnp.bfloat16),         # conv2 tap stack
            ],
        ),
        compiler_params=pltpu.CompilerParams(
            dimension_semantics=("parallel",),
            vmem_limit_bytes=32 * 1024 * 1024,
        ),
    )(x_folded, t_row, w1a, w1b, b1, w2a, w2b, b2)

    return jnp.transpose(out.reshape(Cout, B, H, W), (1, 0, 2, 3))


# ----------------------------- params & reference -----------------------------

def init_params(key, in_channels, out_channels, k, mlp_in):
    ks = jax.random.split(key, 6)

    def uni(kk, shape, bound):
        return jax.random.uniform(kk, shape, jnp.float32, minval=-bound, maxval=bound)

    b1 = 1.0 / math.sqrt(in_channels * k * k)
    b2 = 1.0 / math.sqrt(out_channels * k * k)
    bm = 1.0 / math.sqrt(mlp_in)
    return dict(
        conv1_w=uni(ks[0], (out_channels, in_channels, k, k), b1),
        conv1_b=uni(ks[1], (out_channels,), b1),
        conv2_w=uni(ks[2], (out_channels, out_channels, k, k), b2),
        conv2_b=uni(ks[3], (out_channels,), b2),
        mlp_w=uni(ks[4], (out_channels, mlp_in), bm),   # PyTorch Linear weight (Cout, Din)
        mlp_b=uni(ks[5], (out_channels,), bm),
    )


def ref_forward(x, t, params):
    def conv(xx, w, b):
        y = jax.lax.conv_general_dilated(
            xx, w, window_strides=(1, 1), padding=((0, 1), (0, 1)),
            dimension_numbers=("NCHW", "OIHW", "NCHW"),
            precision=jax.lax.Precision.HIGHEST)
        return y + b[None, :, None, None]

    h = jax.nn.silu(conv(x, params["conv1_w"], params["conv1_b"]))
    if t is not None:
        t_emb = t @ params["mlp_w"].T + params["mlp_b"]
        h = h + t_emb[:, None, None]
    h = jax.nn.silu(conv(h, params["conv2_w"], params["conv2_b"]))
    return h


# ----------------------------- main -----------------------------

if __name__ == "__main__":
    B, Cin, H, Wsp = 2, 4, 16, 16
    Cout = 16        # must equal W for the `x + t[:, None, None]` broadcast (as in PyTorch)
    Din = 32         # mlp_layers=(32,)
    kernel_size = 2

    key = jax.random.PRNGKey(0)
    kp, kx, kt = jax.random.split(key, 3)
    params = init_params(kp, Cin, Cout, kernel_size, Din)
    x = jax.random.normal(kx, (B, Cin, H, Wsp), jnp.float32)
    t = jax.random.normal(kt, (B, Din), jnp.float32)

    out = unet_conv_block_forward(x, t, params)
    out = jax.block_until_ready(out)

    ref = ref_forward(x, t, params)
    assert out.shape == (B, Cout, H, Wsp), out.shape
    # Tolerance covers bf16 MXU operands (f32 accumulation) + approx EUP reciprocal in SiLU.
    if not jnp.allclose(out, ref, atol=3e-2, rtol=3e-2):
        raise AssertionError("Pallas UNetConvBlock output mismatch vs reference")

    print("KERNEL_OK")
</pallas_src>

<mosaic_0001>
module attributes {stable_mosaic.version = 11 : i64} {
  func.func @_unet_block_kernel(%arg0: i32, %arg1: memref<4x256xf32, #tpu.memory_space<vmem>>, %arg2: memref<1x256xf32, #tpu.memory_space<vmem>>, %arg3: memref<16x8xbf16, #tpu.memory_space<vmem>>, %arg4: memref<16x8xbf16, #tpu.memory_space<vmem>>, %arg5: memref<16x1xf32, #tpu.memory_space<vmem>>, %arg6: memref<16x32xbf16, #tpu.memory_space<vmem>>, %arg7: memref<16x32xbf16, #tpu.memory_space<vmem>>, %arg8: memref<16x1xf32, #tpu.memory_space<vmem>>, %arg9: memref<16x256xf32, #tpu.memory_space<vmem>>, %arg10: memref<16x256xbf16, #tpu.memory_space<vmem>>, %arg11: memref<64x256xbf16, #tpu.memory_space<vmem>>) attributes {dimension_semantics = [#tpu.dimension_semantics<parallel>], iteration_bounds = array<i64: 2>, scalar_prefetch = 0 : i64, scratch_operands = 2 : i64, tpu.core_type = #tpu.core_type<tc>, window_params = [{transform_indices = @transform_0, window_bounds = array<i64: 4, 256>}, {transform_indices = @transform_1, window_bounds = array<i64: 1, 256>}, {pipeline_mode = #tpu.pipeline_mode<synchronous>, transform_indices = @transform_2, window_bounds = array<i64: 16, 8>}, {pipeline_mode = #tpu.pipeline_mode<synchronous>, transform_indices = @transform_3, window_bounds = array<i64: 16, 8>}, {pipeline_mode = #tpu.pipeline_mode<synchronous>, transform_indices = @transform_4, window_bounds = array<i64: 16, 1>}, {pipeline_mode = #tpu.pipeline_mode<synchronous>, transform_indices = @transform_5, window_bounds = array<i64: 16, 32>}, {pipeline_mode = #tpu.pipeline_mode<synchronous>, transform_indices = @transform_6, window_bounds = array<i64: 16, 32>}, {pipeline_mode = #tpu.pipeline_mode<synchronous>, transform_indices = @transform_7, window_bounds = array<i64: 16, 1>}, {transform_indices = @transform_8, window_bounds = array<i64: 16, 256>}]} {
    %0 = tpu.iota {dimensions = array<i32: 1>} : vector<1x256xi32>
    %c256_i32 = arith.constant 256 : i32
    %c0_i32 = arith.constant 0 : i32
    %1 = arith.cmpi eq, %c256_i32, %c0_i32 : i32
    %c1_i32 = arith.constant 1 : i32
    %2 = arith.select %1, %c1_i32, %c256_i32 : i32
    %3 = vector.broadcast %2 : i32 to vector<1x256xi32>
    %4 = arith.remsi %0, %3 : vector<1x256xi32>
    %c0_i32_0 = arith.constant 0 : i32
    %5 = vector.broadcast %c0_i32_0 : i32 to vector<1x256xi32>
    %6 = arith.cmpi ne, %4, %5 : vector<1x256xi32>
    %c0_i32_1 = arith.constant 0 : i32
    %7 = vector.broadcast %c0_i32_1 : i32 to vector<1x256xi32>
    %8 = arith.cmpi slt, %4, %7 : vector<1x256xi32>
    %c0_i32_2 = arith.constant 0 : i32
    %9 = arith.cmpi slt, %2, %c0_i32_2 : i32
    %10 = vector.broadcast %9 : i1 to vector<1x256xi1>
    %11 = vector.broadcast %10 : vector<1x256xi1> to vector<1x256xi1>
    %12 = arith.xori %8, %11 : vector<1x256xi1>
    %13 = arith.andi %12, %6 : vector<1x256xi1>
    %14 = vector.broadcast %2 : i32 to vector<1x256xi32>
    %15 = arith.addi %4, %14 : vector<1x256xi32>
    %16 = arith.select %13, %15, %4 : vector<1x256xi1>, vector<1x256xi32>
    %c16_i32 = arith.constant 16 : i32
    %c0_i32_3 = arith.constant 0 : i32
    %17 = arith.cmpi eq, %c16_i32, %c0_i32_3 : i32
    %c1_i32_4 = arith.constant 1 : i32
    %18 = arith.select %17, %c1_i32_4, %c16_i32 : i32
    %19 = vector.broadcast %18 : i32 to vector<1x256xi32>
    %20 = arith.remsi %16, %19 : vector<1x256xi32>
    %c0_i32_5 = arith.constant 0 : i32
    %21 = vector.broadcast %c0_i32_5 : i32 to vector<1x256xi32>
    %22 = arith.cmpi ne, %20, %21 : vector<1x256xi32>
    %c0_i32_6 = arith.constant 0 : i32
    %23 = vector.broadcast %c0_i32_6 : i32 to vector<1x256xi32>
    %24 = arith.cmpi slt, %20, %23 : vector<1x256xi32>
    %c0_i32_7 = arith.constant 0 : i32
    %25 = arith.cmpi slt, %18, %c0_i32_7 : i32
    %26 = vector.broadcast %25 : i1 to vector<1x256xi1>
    %27 = vector.broadcast %26 : vector<1x256xi1> to vector<1x256xi1>
    %28 = arith.xori %24, %27 : vector<1x256xi1>
    %29 = arith.andi %28, %22 : vector<1x256xi1>
    %30 = vector.broadcast %18 : i32 to vector<1x256xi32>
    %31 = arith.addi %20, %30 : vector<1x256xi32>
    %32 = arith.select %29, %31, %20 : vector<1x256xi1>, vector<1x256xi32>
    %c15_i32 = arith.constant 15 : i32
    %33 = vector.broadcast %c15_i32 : i32 to vector<1x256xi32>
    %34 = arith.cmpi slt, %32, %33 : vector<1x256xi32>
    %c240_i32 = arith.constant 240 : i32
    %35 = vector.broadcast %c240_i32 : i32 to vector<1x256xi32>
    %36 = arith.cmpi slt, %16, %35 : vector<1x256xi32>
    %37 = arith.andi %34, %36 : vector<1x256xi1>
    %c0 = arith.constant 0 : index
    %c0_8 = arith.constant 0 : index
    %38 = vector.load %arg1[%c0, %c0_8] : memref<4x256xf32, #tpu.memory_space<vmem>>, vector<4x256xf32>
    %39 = arith.truncf %38 : vector<4x256xf32> to vector<4x256xbf16>
    %c0_9 = arith.constant 0 : index
    %c0_10 = arith.constant 0 : index
    %40 = vector.load %arg10[%c0_9, %c0_10] : memref<16x256xbf16, #tpu.memory_space<vmem>>, vector<4x256xbf16>
    tpu.vector_store %arg10[%c0_9, %c0_10], %39 {strides = array<i32>} : memref<16x256xbf16, #tpu.memory_space<vmem>>, vector<4x256xbf16>,
    %c255_i32 = arith.constant 255 : i32
    %41 = tpu.dynamic_rotate %38 by %c255_i32 dim 1 : vector<4x256xf32>, i32 -> vector<4x256xf32>
    %cst = arith.constant 0.000000e+00 : f32
    %42 = vector.shape_cast %34 : vector<1x256xi1> to vector<1x256xi1>
    %43 = vector.broadcast %42 : vector<1x256xi1> to vector<4x256xi1>
    %44 = vector.broadcast %cst : f32 to vector<4x256xf32>
    %45 = arith.select %43, %41, %44 : vector<4x256xi1>, vector<4x256xf32>
    %46 = arith.truncf %45 : vector<4x256xf32> to vector<4x256xbf16>
    %c4 = arith.constant 4 : index
    %c0_11 = arith.constant 0 : index
    %47 = vector.load %arg10[%c4, %c0_11] : memref<16x256xbf16, #tpu.memory_space<vmem>>, vector<4x256xbf16>
    tpu.vector_store %arg10[%c4, %c0_11], %46 {strides = array<i32>} : memref<16x256xbf16, #tpu.memory_space<vmem>>, vector<4x256xbf16>,
    %c0_12 = arith.constant 0 : index
    %c0_13 = arith.constant 0 : index
    %48 = vector.load %arg3[%c0_12, %c0_13] : memref<16x8xbf16, #tpu.memory_space<vmem>>, vector<16x8xbf16>
    %c0_14 = arith.constant 0 : index
    %c0_15 = arith.constant 0 : index
    %49 = vector.load %arg10[%c0_14, %c0_15] : memref<16x256xbf16, #tpu.memory_space<vmem>>, vector<8x256xbf16>
    %cst_16 = arith.constant dense<0.000000e+00> : vector<16x256xf32>
    %50 = tpu.matmul %48, %49, %cst_16 {dimension_numbers = #tpu.dot_dimension_numbers<[1], [0], [0], [1], [0, 0, 1, 1], [], []>} : vector<16x8xbf16>, vector<8x256xbf16>, vector<16x256xf32> -> vector<16x256xf32>
    %c240_i32_17 = arith.constant 240 : i32
    %51 = tpu.dynamic_rotate %38 by %c240_i32_17 dim 1 : vector<4x256xf32>, i32 -> vector<4x256xf32>
    %cst_18 = arith.constant 0.000000e+00 : f32
    %52 = vector.shape_cast %36 : vector<1x256xi1> to vector<1x256xi1>
    %53 = vector.broadcast %52 : vector<1x256xi1> to vector<4x256xi1>
    %54 = vector.broadcast %cst_18 : f32 to vector<4x256xf32>
    %55 = arith.select %53, %51, %54 : vector<4x256xi1>, vector<4x256xf32>
    %56 = arith.truncf %55 : vector<4x256xf32> to vector<4x256xbf16>
    %c8 = arith.constant 8 : index
    %c0_19 = arith.constant 0 : index
    %57 = vector.load %arg10[%c8, %c0_19] : memref<16x256xbf16, #tpu.memory_space<vmem>>, vector<4x256xbf16>
    tpu.vector_store %arg10[%c8, %c0_19], %56 {strides = array<i32>} : memref<16x256xbf16, #tpu.memory_space<vmem>>, vector<4x256xbf16>,
    %c239_i32 = arith.constant 239 : i32
    %58 = tpu.dynamic_rotate %38 by %c239_i32 dim 1 : vector<4x256xf32>, i32 -> vector<4x256xf32>
    %cst_20 = arith.constant 0.000000e+00 : f32
    %59 = vector.shape_cast %37 : vector<1x256xi1> to vector<1x256xi1>
    %60 = vector.broadcast %59 : vector<1x256xi1> to vector<4x256xi1>
    %61 = vector.broadcast %cst_20 : f32 to vector<4x256xf32>
    %62 = arith.select %60, %58, %61 : vector<4x256xi1>, vector<4x256xf32>
    %63 = arith.truncf %62 : vector<4x256xf32> to vector<4x256xbf16>
    %c12 = arith.constant 12 : index
    %c0_21 = arith.constant 0 : index
    %64 = vector.load %arg10[%c12, %c0_21] : memref<16x256xbf16, #tpu.memory_space<vmem>>, vector<4x256xbf16>
    tpu.vector_store %arg10[%c12, %c0_21], %63 {strides = array<i32>} : memref<16x256xbf16, #tpu.memory_space<vmem>>, vector<4x256xbf16>,
    %c0_22 = arith.constant 0 : index
    %c0_23 = arith.constant 0 : index
    %65 = vector.load %arg4[%c0_22, %c0_23] : memref<16x8xbf16, #tpu.memory_space<vmem>>, vector<16x8xbf16>
    %c8_24 = arith.constant 8 : index
    %c0_25 = arith.constant 0 : index
    %66 = vector.load %arg10[%c8_24, %c0_25] : memref<16x256xbf16, #tpu.memory_space<vmem>>, vector<8x256xbf16>
    %cst_26 = arith.constant dense<0.000000e+00> : vector<16x256xf32>
    %67 = tpu.matmul %65, %66, %cst_26 {dimension_numbers = #tpu.dot_dimension_numbers<[1], [0], [0], [1], [0, 0, 1, 1], [], []>} : vector<16x8xbf16>, vector<8x256xbf16>, vector<16x256xf32> -> vector<16x256xf32>
    %68 = arith.addf %50, %67 : vector<16x256xf32>
    %c0_27 = arith.constant 0 : index
    %c0_28 = arith.constant 0 : index
    %69 = vector.load %arg5[%c0_27, %c0_28] : memref<16x1xf32, #tpu.memory_space<vmem>>, vector<16x1xf32>
    %70 = vector.broadcast %69 : vector<16x1xf32> to vector<16x256xf32>
    %71 = arith.addf %68, %70 : vector<16x256xf32>
    %cst_29 = arith.constant 0.000000e+00 : f32
    %72 = vector.broadcast %cst_29 : f32 to vector<16x256xf32>
    %73 = arith.subf %72, %71 : vector<16x256xf32>
    %74 = math.exp %73 : vector<16x256xf32>
    %cst_30 = arith.constant 1.000000e+00 : f32
    %75 = vector.broadcast %cst_30 : f32 to vector<16x256xf32>
    %76 = arith.addf %75, %74 : vector<16x256xf32>
    %77 = tpu.reciprocal %76 {approx = true} : vector<16x256xf32> -> vector<16x256xf32>
    %78 = arith.mulf %71, %77 : vector<16x256xf32>
    %c0_31 = arith.constant 0 : index
    %c0_32 = arith.constant 0 : index
    %79 = vector.load %arg2[%c0_31, %c0_32] : memref<1x256xf32, #tpu.memory_space<vmem>>, vector<1x256xf32>
    %80 = vector.broadcast %79 : vector<1x256xf32> to vector<16x256xf32>
    %81 = arith.addf %78, %80 : vector<16x256xf32>
    %82 = arith.truncf %81 : vector<16x256xf32> to vector<16x256xbf16>
    %c0_33 = arith.constant 0 : index
    %c0_34 = arith.constant 0 : index
    %83 = vector.load %arg11[%c0_33, %c0_34] : memref<64x256xbf16, #tpu.memory_space<vmem>>, vector<16x256xbf16>
    tpu.vector_store %arg11[%c0_33, %c0_34], %82 {strides = array<i32>} : memref<64x256xbf16, #tpu.memory_space<vmem>>, vector<16x256xbf16>,
    %c255_i32_35 = arith.constant 255 : i32
    %84 = tpu.dynamic_rotate %81 by %c255_i32_35 dim 1 : vector<16x256xf32>, i32 -> vector<16x256xf32>
    %cst_36 = arith.constant 0.000000e+00 : f32
    %85 = vector.shape_cast %34 : vector<1x256xi1> to vector<1x256xi1>
    %86 = vector.broadcast %85 : vector<1x256xi1> to vector<16x256xi1>
    %87 = vector.broadcast %cst_36 : f32 to vector<16x256xf32>
    %88 = arith.select %86, %84, %87 : vector<16x256xi1>, vector<16x256xf32>
    %89 = arith.truncf %88 : vector<16x256xf32> to vector<16x256xbf16>
    %c16 = arith.constant 16 : index
    %c0_37 = arith.constant 0 : index
    %90 = vector.load %arg11[%c16, %c0_37] : memref<64x256xbf16, #tpu.memory_space<vmem>>, vector<16x256xbf16>
    tpu.vector_store %arg11[%c16, %c0_37], %89 {strides = array<i32>} : memref<64x256xbf16, #tpu.memory_space<vmem>>, vector<16x256xbf16>,
    %c0_38 = arith.constant 0 : index
    %c0_39 = arith.constant 0 : index
    %91 = vector.load %arg6[%c0_38, %c0_39] : memref<16x32xbf16, #tpu.memory_space<vmem>>, vector<16x32xbf16>
    %c0_40 = arith.constant 0 : index
    %c0_41 = arith.constant 0 : index
    %92 = vector.load %arg11[%c0_40, %c0_41] : memref<64x256xbf16, #tpu.memory_space<vmem>>, vector<32x256xbf16>
    %cst_42 = arith.constant dense<0.000000e+00> : vector<16x256xf32>
    %93 = tpu.matmul %91, %92, %cst_42 {dimension_numbers = #tpu.dot_dimension_numbers<[1], [0], [0], [1], [0, 0, 1, 1], [], []>} : vector<16x32xbf16>, vector<32x256xbf16>, vector<16x256xf32> -> vector<16x256xf32>
    %c240_i32_43 = arith.constant 240 : i32
    %94 = tpu.dynamic_rotate %81 by %c240_i32_43 dim 1 : vector<16x256xf32>, i32 -> vector<16x256xf32>
    %cst_44 = arith.constant 0.000000e+00 : f32
    %95 = vector.shape_cast %36 : vector<1x256xi1> to vector<1x256xi1>
    %96 = vector.broadcast %95 : vector<1x256xi1> to vector<16x256xi1>
    %97 = vector.broadcast %cst_44 : f32 to vector<16x256xf32>
    %98 = arith.select %96, %94, %97 : vector<16x256xi1>, vector<16x256xf32>
    %99 = arith.truncf %98 : vector<16x256xf32> to vector<16x256xbf16>
    %c32 = arith.constant 32 : index
    %c0_45 = arith.constant 0 : index
    %100 = vector.load %arg11[%c32, %c0_45] : memref<64x256xbf16, #tpu.memory_space<vmem>>, vector<16x256xbf16>
    tpu.vector_store %arg11[%c32, %c0_45], %99 {strides = array<i32>} : memref<64x256xbf16, #tpu.memory_space<vmem>>, vector<16x256xbf16>,
    %c239_i32_46 = arith.constant 239 : i32
    %101 = tpu.dynamic_rotate %81 by %c239_i32_46 dim 1 : vector<16x256xf32>, i32 -> vector<16x256xf32>
    %cst_47 = arith.constant 0.000000e+00 : f32
    %102 = vector.shape_cast %37 : vector<1x256xi1> to vector<1x256xi1>
    %103 = vector.broadcast %102 : vector<1x256xi1> to vector<16x256xi1>
    %104 = vector.broadcast %cst_47 : f32 to vector<16x256xf32>
    %105 = arith.select %103, %101, %104 : vector<16x256xi1>, vector<16x256xf32>
    %106 = arith.truncf %105 : vector<16x256xf32> to vector<16x256xbf16>
    %c48 = arith.constant 48 : index
    %c0_48 = arith.constant 0 : index
    %107 = vector.load %arg11[%c48, %c0_48] : memref<64x256xbf16, #tpu.memory_space<vmem>>, vector<16x256xbf16>
    tpu.vector_store %arg11[%c48, %c0_48], %106 {strides = array<i32>} : memref<64x256xbf16, #tpu.memory_space<vmem>>, vector<16x256xbf16>,
    %c0_49 = arith.constant 0 : index
    %c0_50 = arith.constant 0 : index
    %108 = vector.load %arg7[%c0_49, %c0_50] : memref<16x32xbf16, #tpu.memory_space<vmem>>, vector<16x32xbf16>
    %c32_51 = arith.constant 32 : index
    %c0_52 = arith.constant 0 : index
    %109 = vector.load %arg11[%c32_51, %c0_52] : memref<64x256xbf16, #tpu.memory_space<vmem>>, vector<32x256xbf16>
    %cst_53 = arith.constant dense<0.000000e+00> : vector<16x256xf32>
    %110 = tpu.matmul %108, %109, %cst_53 {dimension_numbers = #tpu.dot_dimension_numbers<[1], [0], [0], [1], [0, 0, 1, 1], [], []>} : vector<16x32xbf16>, vector<32x256xbf16>, vector<16x256xf32> -> vector<16x256xf32>
    %111 = arith.addf %93, %110 : vector<16x256xf32>
    %c0_54 = arith.constant 0 : index
    %c0_55 = arith.constant 0 : index
    %112 = vector.load %arg8[%c0_54, %c0_55] : memref<16x1xf32, #tpu.memory_space<vmem>>, vector<16x1xf32>
    %113 = vector.broadcast %112 : vector<16x1xf32> to vector<16x256xf32>
    %114 = arith.addf %111, %113 : vector<16x256xf32>
    %cst_56 = arith.constant 0.000000e+00 : f32
    %115 = vector.broadcast %cst_56 : f32 to vector<16x256xf32>
    %116 = arith.subf %115, %114 : vector<16x256xf32>
    %117 = math.exp %116 : vector<16x256xf32>
    %cst_57 = arith.constant 1.000000e+00 : f32
    %118 = vector.broadcast %cst_57 : f32 to vector<16x256xf32>
    %119 = arith.addf %118, %117 : vector<16x256xf32>
    %120 = tpu.reciprocal %119 {approx = true} : vector<16x256xf32> -> vector<16x256xf32>
    %121 = arith.mulf %114, %120 : vector<16x256xf32>
    %c0_58 = arith.constant 0 : index
    %c0_59 = arith.constant 0 : index
    %122 = vector.load %arg9[%c0_58, %c0_59] : memref<16x256xf32, #tpu.memory_space<vmem>>, vector<16x256xf32>
    tpu.vector_store %arg9[%c0_58, %c0_59], %121 {strides = array<i32>} : memref<16x256xf32, #tpu.memory_space<vmem>>, vector<16x256xf32>,
    return
  }
  func.func @transform_0(%arg0: i32) -> (i32, i32) {
    %c0_i32 = arith.constant 0 : i32
    %c0_i32_0 = arith.constant 0 : i32
    return %c0_i32, %arg0 : i32, i32
  }
  func.func @transform_1(%arg0: i32) -> (i32, i32) {
    %c0_i32 = arith.constant 0 : i32
    %c0_i32_0 = arith.constant 0 : i32
    return %c0_i32, %arg0 : i32, i32
  }
  func.func @transform_2(%arg0: i32) -> (i32, i32) {
    %c0_i32 = arith.constant 0 : i32
    %c0_i32_0 = arith.constant 0 : i32
    %c0_i32_1 = arith.constant 0 : i32
    return %c0_i32, %c0_i32_0 : i32, i32
  }
  func.func @transform_3(%arg0: i32) -> (i32, i32) {
    %c0_i32 = arith.constant 0 : i32
    %c0_i32_0 = arith.constant 0 : i32
    %c0_i32_1 = arith.constant 0 : i32
    return %c0_i32, %c0_i32_0 : i32, i32
  }
  func.func @transform_4(%arg0: i32) -> (i32, i32) {
    %c0_i32 = arith.constant 0 : i32
    %c0_i32_0 = arith.constant 0 : i32
    %c0_i32_1 = arith.constant 0 : i32
    return %c0_i32, %c0_i32_0 : i32, i32
  }
  func.func @transform_5(%arg0: i32) -> (i32, i32) {
    %c0_i32 = arith.constant 0 : i32
    %c0_i32_0 = arith.constant 0 : i32
    %c0_i32_1 = arith.constant 0 : i32
    return %c0_i32, %c0_i32_0 : i32, i32
  }
  func.func @transform_6(%arg0: i32) -> (i32, i32) {
    %c0_i32 = arith.constant 0 : i32
    %c0_i32_0 = arith.constant 0 : i32
    %c0_i32_1 = arith.constant 0 : i32
    return %c0_i32, %c0_i32_0 : i32, i32
  }
  func.func @transform_7(%arg0: i32) -> (i32, i32) {
    %c0_i32 = arith.constant 0 : i32
    %c0_i32_0 = arith.constant 0 : i32
    %c0_i32_1 = arith.constant 0 : i32
    return %c0_i32, %c0_i32_0 : i32, i32
  }
  func.func @transform_8(%arg0: i32) -> (i32, i32) {
    %c0_i32 = arith.constant 0 : i32
    %c0_i32_0 = arith.constant 0 : i32
    return %c0_i32, %arg0 : i32, i32
  }
}

</mosaic_0001>

<llo_original>
// kernel: tpu_custom_call.1
$region0: #{tpu_custom_call.1}
  #allocation0 [shape = 'u32[]', space=smem, size = 0x4, offset = 0x4, fixed_abs, tag = 'smem constant byte address 0x4 - core index']
  #allocation1 [shape = 'u32[144,128]{1,0:T(1,128)}', space=vmem, size = 0x12000, scoped, tag = 'internal scratch']
  #allocation2 [shape = 'bf16[16,256]{1,0:T(8,128)(2,1)}', space=vmem, size = 0x2000, scoped, tag = 'scratch operand']
  #allocation3 [shape = 'bf16[64,256]{1,0:T(8,128)(2,1)}', space=vmem, size = 0x8000, scoped, tag = 'scratch operand']
  %s0 = inlined_call_operand.vmem [shape: f32[4,512], index: 0, kind: input, shape index: {}]
  %s1 = inlined_call_operand.vmem [shape: f32[1,512], index: 1, kind: input, shape index: {}]
  %s2 = inlined_call_operand.vmem [shape: bf16[16,8], index: 2, kind: input, shape index: {}]
  %s3 = inlined_call_operand.vmem [shape: bf16[16,8], index: 3, kind: input, shape index: {}]
  %s4 = inlined_call_operand.vmem [shape: f32[16,1], index: 4, kind: input, shape index: {}]
  %s5 = inlined_call_operand.vmem [shape: bf16[16,32], index: 5, kind: input, shape index: {}]
  %s6 = inlined_call_operand.vmem [shape: bf16[16,32], index: 6, kind: input, shape index: {}]
  %s7 = inlined_call_operand.vmem [shape: f32[16,1], index: 7, kind: input, shape index: {}]
  %s8 = inlined_call_operand.hbm [shape: f32[16,512], index: 8, kind: output, shape index: {}]
  %s9 = sld [smem:[#allocation0]]
  $region65: #{tpu_custom_call.1} parent=0
    _
  %s11 = ssub.s32 1, %s9
  %s12 = scalar_select 0, %s11, %s9
  $region1: #{tpu_custom_call.1} parent=0
    #allocation4 [shape = 'u8[32768]{0}', space=vmem, size = 0x8000, scoped, tag = 'output window, operand 0']
    #allocation5 [shape = 's32[2]{0}', space=sflag, size = 0x8, scoped, tag = 'scoped memory for tpu_custom_call.1']
    %13 = vsyncpa [#allocation5], 0
    %s14 = scalar_lea.sflag [#allocation5], 1
    %15 = vsyncpa %s14, 0
    loop: start=0, step=1, limit=4
    $region2: #{tpu_custom_call.1} parent=1 // loop_pre_header
      _
    $region3: #{tpu_custom_call.1} parent=1 // loop_header
      %s17 = sphi 0, %s21
      %p18 = scmp.ge.s32.totalorder %s17, 4
      %s27 = sphi 0, %s29
      %s30 = sphi 0, %s27
      %s31 = sphi 0, %s30
      %s47 = sphi 0, %s31
      %s53 = sphi 0, %s55
      %s56 = sphi 0, %s53
      %s57 = sphi 0, %s56
      %s73 = sphi 0, %s57
      %s77 = sphi 0, %s77
      %s79 = sphi 0, %s77
      %s80 = sphi 0, %s79
      %s94 = sphi 0, %s80
      %s98 = sphi 0, %s98
      %s100 = sphi 0, %s98
      %s101 = sphi 0, %s100
      %s115 = sphi 0, %s101
      %s119 = sphi 0, %s119
      %s121 = sphi 0, %s119
      %s122 = sphi 0, %s121
      %s136 = sphi 0, %s122
      %s140 = sphi 0, %s140
      %s142 = sphi 0, %s140
      %s143 = sphi 0, %s142
      %s157 = sphi 0, %s143
      %s161 = sphi 0, %s161
      %s163 = sphi 0, %s161
      %s164 = sphi 0, %s163
      %s178 = sphi 0, %s164
      %s182 = sphi 0, %s182
      %s184 = sphi 0, %s182
      %s185 = sphi 0, %s184
      %s199 = sphi 0, %s185
      %s205 = sphi 0, %s207
      %s208 = sphi 0, %s205
      %s209 = sphi 0, %s208
      %s225 = sphi 0, %s209
    $region4: #{tpu_custom_call.1} parent=1 // loop_header_branch
      %20 = sbr.rel (%p18) target = $region8
    $region5: #{tpu_custom_call.1} parent=1 // loop_body
      %s22 = ssub.s32 %s17, 1
      %s23 = ssub.s32 %s17, 2
      %s24 = sadd.s32 %s17, 1
      %s25 = ssub.s32 %s17, %s24
      %p26 = scmp.eq.s32.totalorder %s25, 0
      %s28 = sadd.s32 %s27, 1
      %s29 = scalar_select %p26, %s27, %s28
      %p32 = pneg %p26
      %p33 = scmp.eq.s32.totalorder %s17, 1
      %p34 = por %p32, %p33
      %p35 = scmp.ne.s32.totalorder %s27, %s30
      %p36 = scmp.eq.s32.totalorder %s17, 0
      %p37 = por %p35, %p36
      %p38 = scmp.ne.s32.totalorder %s27, %s30
      %p39 = scmp.eq.s32.totalorder %s22, 1
      %p40 = por %p38, %p39
      %p41 = scmp.ne.s32.totalorder %s30, %s31
      %p42 = scmp.eq.s32.totalorder %s22, 0
      %p43 = por %p41, %p42
      %p44 = scmp.ne.s32.totalorder %s30, %s31
      %p45 = scmp.eq.s32.totalorder %s23, 1
      %p46 = por %p44, %p45
      %p48 = scmp.ne.s32.totalorder %s31, %s47
      %p49 = scmp.eq.s32.totalorder %s23, 0
      %p50 = por %p48, %p49
      %s51 = ssub.s32 %s17, %s24
      %p52 = scmp.eq.s32.totalorder %s51, 0
      %s54 = sadd.s32 %s53, 1
      %s55 = scalar_select %p52, %s53, %s54
      %p58 = pneg %p52
      %p59 = scmp.eq.s32.totalorder %s17, 1
      %p60 = por %p58, %p59
      %p61 = scmp.ne.s32.totalorder %s53, %s56
      %p62 = scmp.eq.s32.totalorder %s17, 0
      %p63 = por %p61, %p62
      %p64 = scmp.ne.s32.totalorder %s53, %s56
      %p65 = scmp.eq.s32.totalorder %s22, 1
      %p66 = por %p64, %p65
      %p67 = scmp.ne.s32.totalorder %s56, %s57
      %p68 = scmp.eq.s32.totalorder %s22, 0
      %p69 = por %p67, %p68
      %p70 = scmp.ne.s32.totalorder %s56, %s57
      %p71 = scmp.eq.s32.totalorder %s23, 1
      %p72 = por %p70, %p71
      %p74 = scmp.ne.s32.totalorder %s57, %s73
      %p75 = scmp.eq.s32.totalorder %s23, 0
      %p76 = por %p74, %p75
      %s78 = sadd.s32 %s77, 1
      %p81 = scmp.eq.s32.totalorder %s17, 1
      %p82 = scmp.ne.s32.totalorder %s77, %s79
      %p83 = scmp.eq.s32.totalorder %s17, 0
      %p84 = por %p82, %p83
      %p85 = scmp.ne.s32.totalorder %s77, %s79
      %p86 = scmp.eq.s32.totalorder %s22, 1
      %p87 = por %p85, %p86
      %p88 = scmp.ne.s32.totalorder %s79, %s80
      %p89 = scmp.eq.s32.totalorder %s22, 0
      %p90 = por %p88, %p89
      %p91 = scmp.ne.s32.totalorder %s79, %s80
      %p92 = scmp.eq.s32.totalorder %s23, 1
      %p93 = por %p91, %p92
      %p95 = scmp.ne.s32.totalorder %s80, %s94
      %p96 = scmp.eq.s32.totalorder %s23, 0
      %p97 = por %p95, %p96
      %s99 = sadd.s32 %s98, 1
      %p102 = scmp.eq.s32.totalorder %s17, 1
      %p103 = scmp.ne.s32.totalorder %s98, %s100
      %p104 = scmp.eq.s32.totalorder %s17, 0
      %p105 = por %p103, %p104
      %p106 = scmp.ne.s32.totalorder %s98, %s100
      %p107 = scmp.eq.s32.totalorder %s22, 1
      %p108 = por %p106, %p107
      %p109 = scmp.ne.s32.totalorder %s100, %s101
      %p110 = scmp.eq.s32.totalorder %s22, 0
      %p111 = por %p109, %p110
      %p112 = scmp.ne.s32.totalorder %s100, %s101
      %p113 = scmp.eq.s32.totalorder %s23, 1
      %p114 = por %p112, %p113
      %p116 = scmp.ne.s32.totalorder %s101, %s115
      %p117 = scmp.eq.s32.totalorder %s23, 0
      %p118 = por %p116, %p117
      %s120 = sadd.s32 %s119, 1
      %p123 = scmp.eq.s32.totalorder %s17, 1
      %p124 = scmp.ne.s32.totalorder %s119, %s121
      %p125 = scmp.eq.s32.totalorder %s17, 0
      %p126 = por %p124, %p125
      %p127 = scmp.ne.s32.totalorder %s119, %s121
      %p128 = scmp.eq.s32.totalorder %s22, 1
      %p129 = por %p127, %p128
      %p130 = scmp.ne.s32.totalorder %s121, %s122
      %p131 = scmp.eq.s32.totalorder %s22, 0
      %p132 = por %p130, %p131
      %p133 = scmp.ne.s32.totalorder %s121, %s122
      %p134 = scmp.eq.s32.totalorder %s23, 1
      %p135 = por %p133, %p134
      %p137 = scmp.ne.s32.totalorder %s122, %s136
      %p138 = scmp.eq.s32.totalorder %s23, 0
      %p139 = por %p137, %p138
      %s141 = sadd.s32 %s140, 1
      %p144 = scmp.eq.s32.totalorder %s17, 1
      %p145 = scmp.ne.s32.totalorder %s140, %s142
      %p146 = scmp.eq.s32.totalorder %s17, 0
      %p147 = por %p145, %p146
      %p148 = scmp.ne.s32.totalorder %s140, %s142
      %p149 = scmp.eq.s32.totalorder %s22, 1
      %p150 = por %p148, %p149
      %p151 = scmp.ne.s32.totalorder %s142, %s143
      %p152 = scmp.eq.s32.totalorder %s22, 0
      %p153 = por %p151, %p152
      %p154 = scmp.ne.s32.totalorder %s142, %s143
      %p155 = scmp.eq.s32.totalorder %s23, 1
      %p156 = por %p154, %p155
      %p158 = scmp.ne.s32.totalorder %s143, %s157
      %p159 = scmp.eq.s32.totalorder %s23, 0
      %p160 = por %p158, %p159
      %s162 = sadd.s32 %s161, 1
      %p165 = scmp.eq.s32.totalorder %s17, 1
      %p166 = scmp.ne.s32.totalorder %s161, %s163
      %p167 = scmp.eq.s32.totalorder %s17, 0
      %p168 = por %p166, %p167
      %p169 = scmp.ne.s32.totalorder %s161, %s163
      %p170 = scmp.eq.s32.totalorder %s22, 1
      %p171 = por %p169, %p170
      %p172 = scmp.ne.s32.totalorder %s163, %s164
      %p173 = scmp.eq.s32.totalorder %s22, 0
      %p174 = por %p172, %p173
      %p175 = scmp.ne.s32.totalorder %s163, %s164
      %p176 = scmp.eq.s32.totalorder %s23, 1
      %p177 = por %p175, %p176
      %p179 = scmp.ne.s32.totalorder %s164, %s178
      %p180 = scmp.eq.s32.totalorder %s23, 0
      %p181 = por %p179, %p180
      %s183 = sadd.s32 %s182, 1
      %p186 = scmp.eq.s32.totalorder %s17, 1
      %p187 = scmp.ne.s32.totalorder %s182, %s184
      %p188 = scmp.eq.s32.totalorder %s17, 0
      %p189 = por %p187, %p188
      %p190 = scmp.ne.s32.totalorder %s182, %s184
      %p191 = scmp.eq.s32.totalorder %s22, 1
      %p192 = por %p190, %p191
      %p193 = scmp.ne.s32.totalorder %s184, %s185
      %p194 = scmp.eq.s32.totalorder %s22, 0
      %p195 = por %p193, %p194
      %p196 = scmp.ne.s32.totalorder %s184, %s185
      %p197 = scmp.eq.s32.totalorder %s23, 1
      %p198 = por %p196, %p197
      %p200 = scmp.ne.s32.totalorder %s185, %s199
      %p201 = scmp.eq.s32.totalorder %s23, 0
      %p202 = por %p200, %p201
      %s203 = ssub.s32 %s17, %s24
      %p204 = scmp.eq.s32.totalorder %s203, 0
      %s206 = sadd.s32 %s205, 1
      %s207 = scalar_select %p204, %s205, %s206
      %p210 = pneg %p204
      %p211 = scmp.eq.s32.totalorder %s17, 1
      %p212 = por %p210, %p211
      %p213 = scmp.ne.s32.totalorder %s205, %s208
      %p214 = scmp.eq.s32.totalorder %s17, 0
      %p215 = por %p213, %p214
      %p216 = scmp.ne.s32.totalorder %s205, %s208
      %p217 = scmp.eq.s32.totalorder %s22, 1
      %p218 = por %p216, %p217
      %p219 = scmp.ne.s32.totalorder %s208, %s209
      %p220 = scmp.eq.s32.totalorder %s22, 0
      %p221 = por %p219, %p220
      %p222 = scmp.ne.s32.totalorder %s208, %s209
      %p223 = scmp.eq.s32.totalorder %s23, 1
      %p224 = por %p222, %p223
      %p226 = scmp.ne.s32.totalorder %s209, %s225
      %p227 = scmp.eq.s32.totalorder %s23, 0
      %p228 = por %p226, %p227
      %p229 = scmp.le.s32.totalorder 1, %s17
      %p230 = scmp.lt.s32.totalorder %s17, 3
      %p231 = pnand %p229, %p230
      %p232 = pneg %p231
      // Predicated region
      $region9: #{tpu_custom_call.1} parent=5 // pred_check
        _
      $region10: #{tpu_custom_call.1} parent=5 // pred_check_branch
        %234 = sbr.rel (%p231) target = $region12
      $region11: #{tpu_custom_call.1} parent=5 // pred_region
        %s235 = ssub.s32 %s17, 1
        // Predicated region
        $region13: #{tpu_custom_call.1} parent=11 // pred_check
          %p236 = pneg %p90
        $region14: #{tpu_custom_call.1} parent=11 // pred_check_branch
          %238 = sbr.rel (%p236) target = $region16
        $region15: #{tpu_custom_call.1} parent=11 // pred_region
          _
        $region16: #{tpu_custom_call.1} parent=11 // pred_fallthru
          _
        // Predicated region
        $region17: #{tpu_custom_call.1} parent=11 // pred_check
          %p239 = pneg %p111
        $region18: #{tpu_custom_call.1} parent=11 // pred_check_branch
          %241 = sbr.rel (%p239) target = $region20
        $region19: #{tpu_custom_call.1} parent=11 // pred_region
          _
        $region20: #{tpu_custom_call.1} parent=11 // pred_fallthru
          _
        // Predicated region
        $region21: #{tpu_custom_call.1} parent=11 // pred_check
          %p242 = pneg %p132
        $region22: #{tpu_custom_call.1} parent=11 // pred_check_branch
          %244 = sbr.rel (%p242) target = $region24
        $region23: #{tpu_custom_call.1} parent=11 // pred_region
          _
        $region24: #{tpu_custom_call.1} parent=11 // pred_fallthru
          _
        // Predicated region
        $region25: #{tpu_custom_call.1} parent=11 // pred_check
          %p245 = pneg %p153
        $region26: #{tpu_custom_call.1} parent=11 // pred_check_branch
          %247 = sbr.rel (%p245) target = $region28
        $region27: #{tpu_custom_call.1} parent=11 // pred_region
          _
        $region28: #{tpu_custom_call.1} parent=11 // pred_fallthru
          _
        // Predicated region
        $region29: #{tpu_custom_call.1} parent=11 // pred_check
          %p248 = pneg %p174
        $region30: #{tpu_custom_call.1} parent=11 // pred_check_branch
          %250 = sbr.rel (%p248) target = $region32
        $region31: #{tpu_custom_call.1} parent=11 // pred_region
          _
        $region32: #{tpu_custom_call.1} parent=11 // pred_fallthru
          _
        // Predicated region
        $region33: #{tpu_custom_call.1} parent=11 // pred_check
          %p251 = pneg %p195
        $region34: #{tpu_custom_call.1} parent=11 // pred_check_branch
          %253 = sbr.rel (%p251) target = $region36
        $region35: #{tpu_custom_call.1} parent=11 // pred_region
          _
        $region36: #{tpu_custom_call.1} parent=11 // pred_fallthru
          _
      $region12: #{tpu_custom_call.1} parent=5 // pred_fallthru
        _
      %p254 = scmp.lt.s32.totalorder %s17, 2
      // Predicated region
      $region37: #{tpu_custom_call.1} parent=5 // pred_check
        %p255 = pneg %p254
      $region38: #{tpu_custom_call.1} parent=5 // pred_check_branch
        %257 = sbr.rel (%p255) target = $region40
      $region39: #{tpu_custom_call.1} parent=5 // pred_region
        // Predicated region
        $region41: #{tpu_custom_call.1} parent=39 // pred_check
          %p258 = pneg %p37
        $region42: #{tpu_custom_call.1} parent=39 // pred_check_branch
          %260 = sbr.rel (%p258) target = $region44
        $region43: #{tpu_custom_call.1} parent=39 // pred_region
          %s261 = smul.u32 2, %s17
          %p262 = scmp.lt.s32.totalorder %s261, 3
          %s263 = scalar_select %p262, %s261, 3
          %s264 = smul.addr %s263, 4
          %s265 = scalar_lea.vmem %s0, %s264
          %s266 = smul.u32 2, %s17
        $region44: #{tpu_custom_call.1} parent=39 // pred_fallthru
          _
        // Predicated region
        $region45: #{tpu_custom_call.1} parent=39 // pred_check
          %p267 = pneg %p63
        $region46: #{tpu_custom_call.1} parent=39 // pred_check_branch
          %269 = sbr.rel (%p267) target = $region48
        $region47: #{tpu_custom_call.1} parent=39 // pred_region
          %s270 = smul.u32 2, %s17
          %p271 = scmp.lt.s32.totalorder %s270, 3
          %s272 = scalar_select %p271, %s270, 3
          %s273 = scalar_lea.vmem %s1, %s272
          %s274 = smul.u32 2, %s17
        $region48: #{tpu_custom_call.1} parent=39 // pred_fallthru
          _
      $region40: #{tpu_custom_call.1} parent=5 // pred_fallthru
        _
      %p275 = scmp.le.s32.totalorder 1, %s17
      %p276 = scmp.lt.s32.totalorder %s17, 3
      %p277 = pnand %p275, %p276
      %p278 = pneg %p277
      // Predicated region
      $region49: #{tpu_custom_call.1} parent=5 // pred_check
        _
      $region50: #{tpu_custom_call.1} parent=5 // pred_check_branch
        %280 = sbr.rel (%p277) target = $region52
      $region51: #{tpu_custom_call.1} parent=5 // pred_region
        %s281 = ssub.s32 %s17, 1
        %s282 = smul.u32 2, %s22
        %p283 = scmp.lt.s32.totalorder %s282, 3
        %s284 = scalar_select %p283, %s282, 3
        %s285 = smul.addr %s284, 4
        %s286 = scalar_lea.vmem %s0, %s285
        %p287 = pneg %p43
        %p288 = pneg %p40
        %s289 = smul.u32 2, %s22
        %p290 = scmp.lt.s32.totalorder %s289, 3
        %s291 = scalar_select %p290, %s289, 3
        %s292 = scalar_lea.vmem %s1, %s291
        %p293 = pneg %p69
        %p294 = pneg %p66
        %p295 = pneg %p90
        %p296 = pneg %p87
        %p297 = pneg %p111
        %p298 = pneg %p108
        %p299 = pneg %p132
        %p300 = pneg %p129
        %p301 = pneg %p153
        %p302 = pneg %p150
        %p303 = pneg %p174
        %p304 = pneg %p171
        %p305 = pneg %p195
        %p306 = pneg %p192
        %p307 = pneg %p221
        %p308 = pneg %p218
        %s309 = sand.u32 %s208, 1
        %s310 = scalar_lea.sflag [#allocation5], %s309
        %s311 = sand.u32 %s208, 1
        %s312 = smul.addr %s311, 32
        %s313 = scalar_lea.vmem [#allocation4], %s312
        %s314 = smul.u32 2, %s22
        %p315 = scmp.lt.s32.totalorder %s314, 3
        %s316 = scalar_select %p315, %s314, 3
        %s317 = smul.addr %s316, 4
        %s318 = scalar_lea.vmem %s0, %s317
        %s319 = smul.u32 2, %s22
        %s320 = smul.u32 2, %s22
        %p321 = scmp.lt.s32.totalorder %s320, 3
        %s322 = scalar_select %p321, %s320, 3
        %s323 = scalar_lea.vmem %s1, %s322
        %s324 = smul.u32 2, %s22
        %s325 = smul.u32 2, %s22
        %v327 = vlaneseq
        %v328 = vand.u32 %v327, 127
        %v329 = vadd.s32 %v328, 128
        %vm330 = vcmp.lt.s32.totalorder %v328, 0
        %v331 = vsub.s32 0, %v328
        %v332 = vsel %vm330, %v331, %v328
        %v333 = vshrl.u32 %v332, 8
        %v334 = vand.u32 %v332, 255
        %v335 = vsub.s32 0, %v334
        %v336 = vsel %vm330, %v335, %v334
        %vm337 = vcmp.lt.s32.totalorder %v329, 0
        %v338 = vsub.s32 0, %v329
        %v339 = vsel %vm337, %v338, %v329
        %v340 = vshrl.u32 %v339, 8
        %v341 = vand.u32 %v339, 255
        %v342 = vsub.s32 0, %v341
        %v343 = vsel %vm337, %v342, %v341
        %vm344 = vcmp.ne.s32.totalorder %v336, 0
        %vm345 = vcmp.ne.s32.totalorder %v343, 0
        %vm346 = vcmp.lt.s32.totalorder %v336, 0
        %vm347 = vcmp.lt.s32.totalorder %v343, 0
        %vm348 = vmand %vm346, %vm344
        %vm349 = vmand %vm347, %vm345
        %v350 = vadd.s32 %v336, 256
        %v351 = vadd.s32 %v343, 256
        %v352 = vsel %vm348, %v350, %v336
        %v353 = vsel %vm349, %v351, %v343
        %vm354 = vcmp.lt.s32.totalorder %v352, 0
        %v355 = vsub.s32 0, %v352
        %v356 = vsel %vm354, %v355, %v352
        %v357 = vshrl.u32 %v356, 4
        %v358 = vand.u32 %v356, 15
        %v359 = vsub.s32 0, %v358
        %v360 = vsel %vm354, %v359, %v358
        %vm361 = vcmp.lt.s32.totalorder %v353, 0
        %v362 = vsub.s32 0, %v353
        %v363 = vsel %vm361, %v362, %v353
        %v364 = vshrl.u32 %v363, 4
        %v365 = vand.u32 %v363, 15
        %v366 = vsub.s32 0, %v365
        %v367 = vsel %vm361, %v366, %v365
        %vm368 = vcmp.ne.s32.totalorder %v360, 0
        %vm369 = vcmp.ne.s32.totalorder %v367, 0
        %vm370 = vcmp.lt.s32.totalorder %v360, 0
        %vm371 = vcmp.lt.s32.totalorder %v367, 0
        %vm372 = vmand %vm370, %vm368
        %vm373 = vmand %vm371, %vm369
        %v374 = vadd.s32 %v360, 16
        %v375 = vadd.s32 %v367, 16
        %v376 = vsel %vm372, %v374, %v360
        %v377 = vsel %vm373, %v375, %v367
        %vm378 = vcmp.lt.s32.totalorder %v376, 15
        %vm379 = vcmp.lt.s32.totalorder %v377, 15
        %vm380 = vcmp.lt.s32.totalorder %v352, 240
        %vm381 = vcmp.lt.s32.totalorder %v353, 240
        %vm382 = vmand %vm378, %vm380
        %vm383 = vmand %vm379, %vm381
        %v384 = vld [vmem:[%s318] sm:$0xff]
        %v386 = vcombine.high %v384, %v384
        %v388 = vpack.c.bf16 %v384, %v384
        %v389 = vpack.c.bf16 %v386, %v386
        %v392 = vunpack.c.l.b16 %v388
        %v393 = vunpack.c.l.b16 %v389
        %v394 = vpack.c.b16 %v393, %v392
        %396 = vst [vmem:[#allocation2] sm:$0x33] %v394
        %397 = vrot.lane.b32.xlu0 %v384, 127
        %v398 = vpop.permute.xlu0 %397
        %399 = vrot.lane.b32.xlu0 %v386, 127
        %v400 = vpop.permute.xlu0 %399
        %vm401 = vcmp.lt.s32.totalorder %v328, 127
        %v402 = vsel %vm401, %v398, %v400
        %v403 = vsel %vm401, %v400, %v398
        %v404 = vsel %vm378, 1, 0
        %v405 = vsel %vm379, 1, 0
        %vm406 = vcmp.eq.s32.totalorder %v404, 1
        %vm407 = vcmp.eq.s32.totalorder %v405, 1
        %v408 = vsel %vm406, %v402, 0.0
        %v409 = vsel %vm407, %v403, 0.0
        %v410 = vpack.c.bf16 %v408, %v408
        %v411 = vpack.c.bf16 %v409, %v409
        %v414 = vunpack.c.l.b16 %v410
        %v415 = vunpack.c.l.b16 %v411
        %v416 = vpack.c.b16 %v415, %v414
        %v417 = vrot.slane %v416, 6
        %419 = vst [vmem:[#allocation2] sm:$0xcc] %v417
        %v420 = vld [vmem:[%s2] sm:$0xf]
        %v421 = vld [vmem:[%s2 + $0x4] sm:$0xf]
        %v422 = vld [vmem:[#allocation2] sm:$0xff]
        %423 = vrot.lane.b32.xlu0 %v384, 112
        %v424 = vpop.permute.xlu0 %423
        %425 = vrot.lane.b32.xlu0 %v386, 112
        %v426 = vpop.permute.xlu0 %425
        %vm427 = vcmp.lt.s32.totalorder %v328, 112
        %v428 = vsel %vm427, %v424, %v426
        %v429 = vsel %vm427, %v426, %v424
        %v430 = vsel %vm380, 1, 0
        %v431 = vsel %vm381, 1, 0
        %vm432 = vcmp.eq.s32.totalorder %v430, 1
        %vm433 = vcmp.eq.s32.totalorder %v431, 1
        %v434 = vsel %vm432, %v428, 0.0
        %v435 = vsel %vm433, %v429, 0.0
        %v436 = vpack.c.bf16 %v434, %v434
        %v437 = vpack.c.bf16 %v435, %v435
        %v440 = vunpack.c.l.b16 %v436
        %v441 = vunpack.c.l.b16 %v437
        %v442 = vpack.c.b16 %v441, %v440
        %444 = vst [vmem:[#allocation2 + $0x8] sm:$0x33] %v442
        %445 = vrot.lane.b32.xlu0 %v384, 111
        %v446 = vpop.permute.xlu0 %445
        %447 = vrot.lane.b32.xlu0 %v386, 111
        %v448 = vpop.permute.xlu0 %447
        %vm449 = vcmp.lt.s32.totalorder %v328, 111
        %v450 = vsel %vm449, %v446, %v448
        %v451 = vsel %vm449, %v448, %v446
        %v452 = vsel %vm382, 1, 0
        %v453 = vsel %vm383, 1, 0
        %vm454 = vcmp.eq.s32.totalorder %v452, 1
        %vm455 = vcmp.eq.s32.totalorder %v453, 1
        %v456 = vsel %vm454, %v450, 0.0
        %v457 = vsel %vm455, %v451, 0.0
        %v458 = vpack.c.bf16 %v456, %v456
        %v459 = vpack.c.bf16 %v457, %v457
        %v462 = vunpack.c.l.b16 %v458
        %v463 = vunpack.c.l.b16 %v459
        %v464 = vpack.c.b16 %v463, %v462
        %v465 = vrot.slane %v464, 6
        %467 = vst [vmem:[#allocation2 + $0x8] sm:$0xcc] %v465
        %v468 = vld [vmem:[%s3] sm:$0xf]
        %v469 = vld [vmem:[%s3 + $0x4] sm:$0xf]
        %v470 = vld [vmem:[#allocation2 + $0x8] sm:$0xff]
        %v473 = vunpack.c.l.b16 %v468
        %v474 = vunpack.c.l.b16 %v469
        %v475 = vpack.c.b16 %v474, %v473
        %v477 = vunpack.c.l.b16 %v470
        %v478 = vunpack.c.h.b16 %v470
        %v479 = vpack.c.b16 %v477, %v477
        %v480 = vpack.c.b16 %v478, %v478
        %vm481 = vcmask 64512
        %v483 = vsel %vm481, %v475, 0
        %vm485 = vcmask 1043456
        %v487 = vsel %vm485, %v479, 0
        %v490 = vsel %vm485, %v480, 0
        %492 = vmatprep.subr.bf16.mxu0 0
        %493 = vmatpush1.bf16.msra.mxu0 0
        %494 = vmatprep.subr.bf16.mxu0 0
        %495 = vmatpush1.bf16.msra.mxu0 0
        %496 = vmatprep.subr.bf16.mxu0 0
        %497 = vmatpush1.bf16.msra.mxu0 0
        %498 = vmatprep.subr.bf16.mxu0 0
        %499 = vmatpush1.bf16.msra.mxu0 0
        %500 = vmatprep.subr.bf16.mxu0 0
        %501 = vmatpush1.bf16.msra.mxu0 0
        %502 = vmatprep.subr.bf16.mxu0 0
        %503 = vmatpush1.bf16.msra.mxu0 0
        %504 = vmatprep.subr.bf16.mxu0 0
        %505 = vmatpush1.bf16.msra.mxu0 0
        %506 = vmatprep.subr.bf16.mxu0 %v490
        %507 = vmatpush1.bf16.msra.mxu0 %v487
        %508 = vmatprep.subr.bf16.mxu0 0
        %509 = vmatpush2.bf16.msra.mxu0 0
        %510 = vmatprep.subr.bf16.mxu0 0
        %511 = vmatpush2.bf16.msra.mxu0 0
        %512 = vmatprep.subr.bf16.mxu0 0
        %513 = vmatpush2.bf16.msra.mxu0 0
        %514 = vmatprep.subr.bf16.mxu0 0
        %515 = vmatpush2.bf16.msra.mxu0 0
        %516 = vmatprep.subr.bf16.mxu0 0
        %517 = vmatpush2.bf16.msra.mxu0 0
        %518 = vmatprep.subr.bf16.mxu0 0
        %519 = vmatpush2.bf16.msra.mxu0 0
        %520 = vmatprep.subr.bf16.mxu0 0
        %521 = vmatpush2.bf16.msra.mxu0 0
        %522 = vmatprep.subr.bf16.mxu0 0
        %523 = vmatpush2.bf16.msra.mxu0 0
        %524 = vmatprep.mubr.bf16.mxu0 0
        %525 = vmatmul.mubr.bf16.gmra.mxu0 %v483
        %v526 = vpop.f32.mrf.mxu0
        %v527 = vadd.f32 0.0, %v526
        %v528 = vpop.f32.mrf.mxu0
        %v529 = vadd.f32 0.0, %v528
        %v530 = vpop.f32.mrf.mxu0
        %v531 = vadd.f32 0.0, %v530
        %v532 = vpop.f32.mrf.mxu0
        %v533 = vadd.f32 0.0, %v532
        %534 = vdwg.mxu0
        %v537 = vunpack.c.l.b16 %v420
        %v538 = vunpack.c.l.b16 %v421
        %v539 = vpack.c.b16 %v538, %v537
        %v541 = vunpack.c.l.b16 %v422
        %v542 = vunpack.c.h.b16 %v422
        %v543 = vpack.c.b16 %v541, %v541
        %v544 = vpack.c.b16 %v542, %v542
        %v546 = vsel %vm481, %v539, 0
        %v549 = vsel %vm485, %v543, 0
        %v552 = vsel %vm485, %v544, 0
        %554 = vmatprep.subr.bf16.mxu0 0
        %555 = vmatpush1.bf16.msra.mxu0 0
        %556 = vmatprep.subr.bf16.mxu0 0
        %557 = vmatpush1.bf16.msra.mxu0 0
        %558 = vmatprep.subr.bf16.mxu0 0
        %559 = vmatpush1.bf16.msra.mxu0 0
        %560 = vmatprep.subr.bf16.mxu0 0
        %561 = vmatpush1.bf16.msra.mxu0 0
        %562 = vmatprep.subr.bf16.mxu0 0
        %563 = vmatpush1.bf16.msra.mxu0 0
        %564 = vmatprep.subr.bf16.mxu0 0
        %565 = vmatpush1.bf16.msra.mxu0 0
        %566 = vmatprep.subr.bf16.mxu0 0
        %567 = vmatpush1.bf16.msra.mxu0 0
        %568 = vmatprep.subr.bf16.mxu0 %v552
        %569 = vmatpush1.bf16.msra.mxu0 %v549
        %570 = vmatprep.subr.bf16.mxu0 0
        %571 = vmatpush2.bf16.msra.mxu0 0
        %572 = vmatprep.subr.bf16.mxu0 0
        %573 = vmatpush2.bf16.msra.mxu0 0
        %574 = vmatprep.subr.bf16.mxu0 0
        %575 = vmatpush2.bf16.msra.mxu0 0
        %576 = vmatprep.subr.bf16.mxu0 0
        %577 = vmatpush2.bf16.msra.mxu0 0
        %578 = vmatprep.subr.bf16.mxu0 0
        %579 = vmatpush2.bf16.msra.mxu0 0
        %580 = vmatprep.subr.bf16.mxu0 0
        %581 = vmatpush2.bf16.msra.mxu0 0
        %582 = vmatprep.subr.bf16.mxu0 0
        %583 = vmatpush2.bf16.msra.mxu0 0
        %584 = vmatprep.subr.bf16.mxu0 0
        %585 = vmatpush2.bf16.msra.mxu0 0
        %586 = vmatprep.mubr.bf16.mxu0 0
        %587 = vmatmul.mubr.bf16.gmra.mxu0 %v546
        %v588 = vpop.f32.mrf.mxu0
        %v589 = vadd.f32 %v527, %v588
        %v590 = vpop.f32.mrf.mxu0
        %v591 = vadd.f32 %v529, %v590
        %v592 = vpop.f32.mrf.mxu0
        %v593 = vadd.f32 %v531, %v592
        %v594 = vpop.f32.mrf.mxu0
        %v595 = vadd.f32 %v533, %v594
        %596 = vdwg.mxu0
        %v597 = vld [vmem:[%s4] sm:$0xff]
        %v598 = vld [vmem:[%s4 + $0x8] sm:$0xff]
        %600 = vset.pattern.permute.xlu0 0
        %601 = vperm.xlu0 %600, %v597
        %v602 = vpop.permute.xlu0 %601
        %605 = vset.pattern.permute.xlu0 0
        %606 = vperm.xlu0 %605, %v598
        %v607 = vpop.permute.xlu0 %606
        %v609 = vadd.f32 %v589, %v602
        %v610 = vadd.f32 %v591, %v602
        %v611 = vadd.f32 %v593, %v607
        %v612 = vadd.f32 %v595, %v607
        %v613 = vsub.f32 0.0, %v609
        %v614 = vsub.f32 0.0, %v610
        %v615 = vsub.f32 0.0, %v611
        %v616 = vsub.f32 0.0, %v612
        %v617 = vmul.f32 %v613, 1.442695
        %v618 = vpow.pop %v617
        %v619 = vmul.f32 %v614, 1.442695
        %v620 = vpow.pop %v619
        %v621 = vmul.f32 %v615, 1.442695
        %v622 = vpow.pop %v621
        %v623 = vmul.f32 %v616, 1.442695
        %v624 = vpow.pop %v623
        %v625 = vadd.f32 %v618, 1.0
        %v626 = vadd.f32 %v620, 1.0
        %v627 = vadd.f32 %v622, 1.0
        %v628 = vadd.f32 %v624, 1.0
        %v629 = vrcp.pop %v625
        %v630 = vrcp.pop %v626
        %v631 = vrcp.pop %v627
        %v632 = vrcp.pop %v628
        %v633 = vmul.f32 %v609, %v629
        %v634 = vmul.f32 %v610, %v630
        %v635 = vmul.f32 %v611, %v631
        %v636 = vmul.f32 %v612, %v632
        %v637 = vld [vmem:[%s323] sm:$0x3]
        %v639 = vlaneseq
        %v640 = vshrl.u32 %v639, 7
        %v641 = vsub.s32 0, %v640
        %v642 = vrot.slane %v637, %v641
        %v643 = vlaneseq
        %v644 = vshrl.u32 %v643, 7
        %v645 = vsub.s32 1, %v644
        %v646 = vrot.slane %v637, %v645
        %v649 = vadd.f32 %v633, %v642
        %v650 = vadd.f32 %v634, %v646
        %v651 = vadd.f32 %v635, %v642
        %v652 = vadd.f32 %v636, %v646
        %v653 = vpack.c.bf16 %v651, %v649
        %v654 = vpack.c.bf16 %v652, %v650
        %v657 = vunpack.c.l.b16 %v653
        %v658 = vunpack.c.l.b16 %v654
        %v659 = vunpack.c.h.b16 %v653
        %v660 = vunpack.c.h.b16 %v654
        %v661 = vpack.c.b16 %v658, %v657
        %v662 = vpack.c.b16 %v660, %v659
        %665 = vst [vmem:[#allocation3] sm:$0xff] %v661
        %666 = vst [vmem:[#allocation3 + $0x8] sm:$0xff] %v662
        %667 = vrot.lane.b32.xlu0 %v649, 127
        %v668 = vpop.permute.xlu0 %667
        %669 = vrot.lane.b32.xlu0 %v651, 127
        %v670 = vpop.permute.xlu0 %669
        %671 = vrot.lane.b32.xlu0 %v650, 127
        %v672 = vpop.permute.xlu0 %671
        %673 = vrot.lane.b32.xlu0 %v652, 127
        %v674 = vpop.permute.xlu0 %673
        %v675 = vsel %vm401, %v668, %v672
        %v676 = vsel %vm401, %v670, %v674
        %v677 = vsel %vm401, %v672, %v668
        %v678 = vsel %vm401, %v674, %v670
        %v679 = vsel %vm406, %v675, 0.0
        %v680 = vsel %vm407, %v677, 0.0
        %v681 = vsel %vm406, %v676, 0.0
        %v682 = vsel %vm407, %v678, 0.0
        %v683 = vpack.c.bf16 %v681, %v679
        %v684 = vpack.c.bf16 %v682, %v680
        %v687 = vunpack.c.l.b16 %v683
        %v688 = vunpack.c.l.b16 %v684
        %v689 = vunpack.c.h.b16 %v683
        %v690 = vunpack.c.h.b16 %v684
        %v691 = vpack.c.b16 %v688, %v687
        %v692 = vpack.c.b16 %v690, %v689
        %695 = vst [vmem:[#allocation3 + $0x10] sm:$0xff] %v691
        %696 = vst [vmem:[#allocation3 + $0x18] sm:$0xff] %v692
        %v697 = vld [vmem:[%s5] sm:$0xf]
        %v698 = vld [vmem:[%s5 + $0x4] sm:$0xf]
        %v699 = vld [vmem:[#allocation3] sm:$0xff]
        %v700 = vld [vmem:[#allocation3 + $0x8] sm:$0xff]
        %v701 = vld [vmem:[#allocation3 + $0x10] sm:$0xff]
        %v702 = vld [vmem:[#allocation3 + $0x18] sm:$0xff]
        %703 = vrot.lane.b32.xlu0 %v649, 112
        %v704 = vpop.permute.xlu0 %703
        %705 = vrot.lane.b32.xlu0 %v651, 112
        %v706 = vpop.permute.xlu0 %705
        %707 = vrot.lane.b32.xlu0 %v650, 112
        %v708 = vpop.permute.xlu0 %707
        %709 = vrot.lane.b32.xlu0 %v652, 112
        %v710 = vpop.permute.xlu0 %709
        %v711 = vsel %vm427, %v704, %v708
        %v712 = vsel %vm427, %v706, %v710
        %v713 = vsel %vm427, %v708, %v704
        %v714 = vsel %vm427, %v710, %v706
        %v715 = vsel %vm432, %v711, 0.0
        %v716 = vsel %vm433, %v713, 0.0
        %v717 = vsel %vm432, %v712, 0.0
        %v718 = vsel %vm433, %v714, 0.0
        %v719 = vpack.c.bf16 %v717, %v715
        %v720 = vpack.c.bf16 %v718, %v716
        %v723 = vunpack.c.l.b16 %v719
        %v724 = vunpack.c.l.b16 %v720
        %v725 = vunpack.c.h.b16 %v719
        %v726 = vunpack.c.h.b16 %v720
        %v727 = vpack.c.b16 %v724, %v723
        %v728 = vpack.c.b16 %v726, %v725
        %731 = vst [vmem:[#allocation3 + $0x20] sm:$0xff] %v727
        %732 = vst [vmem:[#allocation3 + $0x28] sm:$0xff] %v728
        %733 = vrot.lane.b32.xlu0 %v649, 111
        %v734 = vpop.permute.xlu0 %733
        %735 = vrot.lane.b32.xlu0 %v651, 111
        %v736 = vpop.permute.xlu0 %735
        %737 = vrot.lane.b32.xlu0 %v650, 111
        %v738 = vpop.permute.xlu0 %737
        %739 = vrot.lane.b32.xlu0 %v652, 111
        %v740 = vpop.permute.xlu0 %739
        %v741 = vsel %vm449, %v734, %v738
        %v742 = vsel %vm449, %v736, %v740
        %v743 = vsel %vm449, %v738, %v734
        %v744 = vsel %vm449, %v740, %v736
        %v745 = vsel %vm454, %v741, 0.0
        %v746 = vsel %vm455, %v743, 0.0
        %v747 = vsel %vm454, %v742, 0.0
        %v748 = vsel %vm455, %v744, 0.0
        %v749 = vpack.c.bf16 %v747, %v745
        %v750 = vpack.c.bf16 %v748, %v746
        %v753 = vunpack.c.l.b16 %v749
        %v754 = vunpack.c.l.b16 %v750
        %v755 = vunpack.c.h.b16 %v749
        %v756 = vunpack.c.h.b16 %v750
        %v757 = vpack.c.b16 %v754, %v753
        %v758 = vpack.c.b16 %v756, %v755
        %761 = vst [vmem:[#allocation3 + $0x30] sm:$0xff] %v757
        %762 = vst [vmem:[#allocation3 + $0x38] sm:$0xff] %v758
        %v763 = vld [vmem:[%s6] sm:$0xf]
        %v764 = vld [vmem:[%s6 + $0x4] sm:$0xf]
        %v765 = vld [vmem:[#allocation3 + $0x20] sm:$0xff]
        %v766 = vld [vmem:[#allocation3 + $0x28] sm:$0xff]
        %v767 = vld [vmem:[#allocation3 + $0x30] sm:$0xff]
        %v768 = vld [vmem:[#allocation3 + $0x38] sm:$0xff]
        %v771 = vunpack.c.l.b16 %v763
        %v772 = vunpack.c.l.b16 %v764
        %v773 = vpack.c.b16 %v772, %v771
        %v778 = vunpack.c.l.b16 %v765
        %v779 = vunpack.c.h.b16 %v765
        %v780 = vunpack.c.l.b16 %v766
        %v781 = vunpack.c.h.b16 %v766
        %v782 = vunpack.c.l.b16 %v767
        %v783 = vunpack.c.h.b16 %v767
        %v784 = vunpack.c.l.b16 %v768
        %v785 = vunpack.c.h.b16 %v768
        %v786 = vpack.c.b16 %v780, %v778
        %v787 = vpack.c.b16 %v781, %v779
        %v788 = vpack.c.b16 %v784, %v782
        %v789 = vpack.c.b16 %v785, %v783
        %vm794 = vcmask 261120
        %v796 = vsel %vm794, %v773, 0
        %798 = vmatprep.subr.bf16.mxu0 0
        %799 = vmatpush1.bf16.msra.mxu0 0
        %800 = vmatprep.subr.bf16.mxu0 0
        %801 = vmatpush1.bf16.msra.mxu0 0
        %802 = vmatprep.subr.bf16.mxu0 0
        %803 = vmatpush1.bf16.msra.mxu0 0
        %804 = vmatprep.subr.bf16.mxu0 0
        %805 = vmatpush1.bf16.msra.mxu0 0
        %806 = vmatprep.subr.bf16.mxu0 0
        %807 = vmatpush1.bf16.msra.mxu0 0
        %808 = vmatprep.subr.bf16.mxu0 0
        %809 = vmatpush1.bf16.msra.mxu0 0
        %810 = vmatprep.subr.bf16.mxu0 %v789
        %811 = vmatpush1.bf16.msra.mxu0 %v788
        %812 = vmatprep.subr.bf16.mxu0 %v787
        %813 = vmatpush1.bf16.msra.mxu0 %v786
        %814 = vmatprep.subr.bf16.mxu0 0
        %815 = vmatpush2.bf16.msra.mxu0 0
        %816 = vmatprep.subr.bf16.mxu0 0
        %817 = vmatpush2.bf16.msra.mxu0 0
        %818 = vmatprep.subr.bf16.mxu0 0
        %819 = vmatpush2.bf16.msra.mxu0 0
        %820 = vmatprep.subr.bf16.mxu0 0
        %821 = vmatpush2.bf16.msra.mxu0 0
        %822 = vmatprep.subr.bf16.mxu0 0
        %823 = vmatpush2.bf16.msra.mxu0 0
        %824 = vmatprep.subr.bf16.mxu0 0
        %825 = vmatpush2.bf16.msra.mxu0 0
        %826 = vmatprep.subr.bf16.mxu0 0
        %827 = vmatpush2.bf16.msra.mxu0 0
        %828 = vmatprep.subr.bf16.mxu0 0
        %829 = vmatpush2.bf16.msra.mxu0 0
        %830 = vmatprep.mubr.bf16.mxu0 0
        %831 = vmatmul.mubr.bf16.gmra.mxu0 %v796
        %v832 = vpop.f32.mrf.mxu0
        %v833 = vadd.f32 0.0, %v832
        %v834 = vpop.f32.mrf.mxu0
        %v835 = vadd.f32 0.0, %v834
        %v836 = vpop.f32.mrf.mxu0
        %v837 = vadd.f32 0.0, %v836
        %v838 = vpop.f32.mrf.mxu0
        %v839 = vadd.f32 0.0, %v838
        %840 = vdwg.mxu0
        %v843 = vunpack.c.l.b16 %v697
        %v844 = vunpack.c.l.b16 %v698
        %v845 = vpack.c.b16 %v844, %v843
        %v850 = vunpack.c.l.b16 %v699
        %v851 = vunpack.c.h.b16 %v699
        %v852 = vunpack.c.l.b16 %v700
        %v853 = vunpack.c.h.b16 %v700
        %v854 = vunpack.c.l.b16 %v701
        %v855 = vunpack.c.h.b16 %v701
        %v856 = vunpack.c.l.b16 %v702
        %v857 = vunpack.c.h.b16 %v702
        %v858 = vpack.c.b16 %v852, %v850
        %v859 = vpack.c.b16 %v853, %v851
        %v860 = vpack.c.b16 %v856, %v854
        %v861 = vpack.c.b16 %v857, %v855
        %v867 = vsel %vm794, %v845, 0
        %869 = vmatprep.subr.bf16.mxu0 0
        %870 = vmatpush1.bf16.msra.mxu0 0
        %871 = vmatprep.subr.bf16.mxu0 0
        %872 = vmatpush1.bf16.msra.mxu0 0
        %873 = vmatprep.subr.bf16.mxu0 0
        %874 = vmatpush1.bf16.msra.mxu0 0
        %875 = vmatprep.subr.bf16.mxu0 0
        %876 = vmatpush1.bf16.msra.mxu0 0
        %877 = vmatprep.subr.bf16.mxu0 0
        %878 = vmatpush1.bf16.msra.mxu0 0
        %879 = vmatprep.subr.bf16.mxu0 0
        %880 = vmatpush1.bf16.msra.mxu0 0
        %881 = vmatprep.subr.bf16.mxu0 %v861
        %882 = vmatpush1.bf16.msra.mxu0 %v860
        %883 = vmatprep.subr.bf16.mxu0 %v859
        %884 = vmatpush1.bf16.msra.mxu0 %v858
        %885 = vmatprep.subr.bf16.mxu0 0
        %886 = vmatpush2.bf16.msra.mxu0 0
        %887 = vmatprep.subr.bf16.mxu0 0
        %888 = vmatpush2.bf16.msra.mxu0 0
        %889 = vmatprep.subr.bf16.mxu0 0
        %890 = vmatpush2.bf16.msra.mxu0 0
        %891 = vmatprep.subr.bf16.mxu0 0
        %892 = vmatpush2.bf16.msra.mxu0 0
        %893 = vmatprep.subr.bf16.mxu0 0
        %894 = vmatpush2.bf16.msra.mxu0 0
        %895 = vmatprep.subr.bf16.mxu0 0
        %896 = vmatpush2.bf16.msra.mxu0 0
        %897 = vmatprep.subr.bf16.mxu0 0
        %898 = vmatpush2.bf16.msra.mxu0 0
        %899 = vmatprep.subr.bf16.mxu0 0
        %900 = vmatpush2.bf16.msra.mxu0 0
        %901 = vmatprep.mubr.bf16.mxu0 0
        %902 = vmatmul.mubr.bf16.gmra.mxu0 %v867
        %v903 = vpop.f32.mrf.mxu0
        %v904 = vadd.f32 %v833, %v903
        %v905 = vpop.f32.mrf.mxu0
        %v906 = vadd.f32 %v835, %v905
        %v907 = vpop.f32.mrf.mxu0
        %v908 = vadd.f32 %v837, %v907
        %v909 = vpop.f32.mrf.mxu0
        %v910 = vadd.f32 %v839, %v909
        %911 = vdwg.mxu0
        %v912 = vld [vmem:[%s7] sm:$0xff]
        %v913 = vld [vmem:[%s7 + $0x8] sm:$0xff]
        %915 = vset.pattern.permute.xlu0 0
        %916 = vperm.xlu0 %915, %v912
        %v917 = vpop.permute.xlu0 %916
        %920 = vset.pattern.permute.xlu0 0
        %921 = vperm.xlu0 %920, %v913
        %v922 = vpop.permute.xlu0 %921
        %v924 = vadd.f32 %v904, %v917
        %v925 = vadd.f32 %v906, %v917
        %v926 = vadd.f32 %v908, %v922
        %v927 = vadd.f32 %v910, %v922
        %v928 = vsub.f32 0.0, %v924
        %v929 = vsub.f32 0.0, %v925
        %v930 = vsub.f32 0.0, %v926
        %v931 = vsub.f32 0.0, %v927
        %v932 = vmul.f32 %v928, 1.442695
        %v933 = vpow.pop %v932
        %v934 = vmul.f32 %v929, 1.442695
        %v935 = vpow.pop %v934
        %v936 = vmul.f32 %v930, 1.442695
        %v937 = vpow.pop %v936
        %v938 = vmul.f32 %v931, 1.442695
        %v939 = vpow.pop %v938
        %v940 = vadd.f32 %v933, 1.0
        %v941 = vadd.f32 %v935, 1.0
        %v942 = vadd.f32 %v937, 1.0
        %v943 = vadd.f32 %v939, 1.0
        %v944 = vrcp.pop %v940
        %v945 = vrcp.pop %v941
        %v946 = vrcp.pop %v942
        %v947 = vrcp.pop %v943
        %v948 = vmul.f32 %v924, %v944
        %v949 = vmul.f32 %v925, %v945
        %v950 = vmul.f32 %v926, %v946
        %v951 = vmul.f32 %v927, %v947
        %952 = vst [vmem:[%s313] sm:$0xff] %v948
        %953 = vst [vmem:[%s313 + $0x8] sm:$0xff] %v949
        %954 = vst [vmem:[%s313 + $0x10] sm:$0xff] %v950
        %955 = vst [vmem:[%s313 + $0x18] sm:$0xff] %v951
        %s956 = sand.u32 %s208, 1
        %s957 = scalar_lea.sflag [#allocation5], %s956
        %s958 = sand.u32 %s208, 1
        %s959 = smul.addr %s958, 32
        %s960 = scalar_lea.vmem [#allocation4], %s959
        // Predicated region
        $region53: #{tpu_custom_call.1} parent=51 // pred_check
          %p961 = pneg %p218
        $region54: #{tpu_custom_call.1} parent=51 // pred_check_branch
          %963 = sbr.rel (%p961) target = $region56
        $region55: #{tpu_custom_call.1} parent=51 // pred_region
          %s964 = smul.u32 2, %s22
          %s966 = ssub.s32 512, 512
          %967 = vsyncadd %s957, %s966
          %s968 = smul.addr %s964, 128
          %s969 = scalar_lea.hbm %s8, %s968
          %s970 = sshll.u32 %s960, 4
          %s971 = int_to_ptr.vmem [resolvable:$true] %s970
          %976 = dma.vmem_to_hbm [thread:$0]  %s971, 512, %s969, %s957, 256, 512, 16
        $region56: #{tpu_custom_call.1} parent=51 // pred_fallthru
          _
      $region52: #{tpu_custom_call.1} parent=5 // pred_fallthru
        _
      %p977 = scmp.le.s32.totalorder 2, %s17
      // Predicated region
      $region57: #{tpu_custom_call.1} parent=5 // pred_check
        %p978 = pneg %p977
      $region58: #{tpu_custom_call.1} parent=5 // pred_check_branch
        %980 = sbr.rel (%p978) target = $region60
      $region59: #{tpu_custom_call.1} parent=5 // pred_region
        %s981 = ssub.s32 %s17, 2
        // Predicated region
        $region61: #{tpu_custom_call.1} parent=59 // pred_check
          %p982 = pneg %p224
        $region62: #{tpu_custom_call.1} parent=59 // pred_check_branch
          %984 = sbr.rel (%p982) target = $region64
        $region63: #{tpu_custom_call.1} parent=59 // pred_region
          %s985 = sand.u32 %s209, 1
          %s986 = scalar_lea.sflag [#allocation5], %s985
          %s987 = sand.u32 %s209, 1
          %s988 = smul.addr %s987, 32
          %s989 = scalar_lea.vmem [#allocation4], %s988
          %990 = dma.done %s986, 512
        $region64: #{tpu_custom_call.1} parent=59 // pred_fallthru
          _
      $region60: #{tpu_custom_call.1} parent=5 // pred_fallthru
        _
    $region6: #{tpu_custom_call.1} parent=1 // loop_footer
      %s21 = sadd.s32 1, %s17
    $region7: #{tpu_custom_call.1} parent=1 // loop_footer_branch
      %16 = sbr.rel target = $region3
    $region8: #{tpu_custom_call.1} parent=1 // loop_exit
      _
    %991 = vsyncpa [#allocation5], 1
    %s992 = scalar_lea.sflag [#allocation5], 1
    %993 = vsyncpa %s992, 1

</llo_original>
